<compile_context>
chip_gen: v5e
topology: v5e:2x2
jax: 0.10.0
libtpu: 0.0.40
codegen_flags: <defaults>
</compile_context>

<pallas_src>
import functools

import jax
import jax.numpy as jnp
from jax.experimental import pallas as pl
from jax.experimental.pallas import tpu as pltpu

_LANES = 128  # lane-dense padded feature width


def _actor_kernel(x_ref, w_ref, b_ref, o_ref):
    # x_ref: (TB, F)   w_ref: (4, F, F)   b_ref: (4, F)   o_ref: (TB, F)
    h = x_ref[...]
    for layer in range(4):  # static unroll: 4 uniform matmul+bias+relu layers
        h = jnp.dot(h, w_ref[layer], preferred_element_type=jnp.float32)
        h = jnp.maximum(h + b_ref[layer:layer + 1, :], 0.0)
    o_ref[...] = h


@functools.partial(jax.jit, static_argnames=("action_dim", "block_b"))
def actor_forward(state, w_stack, b_stack, *, action_dim, block_b=256):
    """state: [B, state_dim] f32.
    w_stack: (4, F, F) padded, pre-transposed (in, out) weights.
    b_stack: (4, F) padded biases.
    Returns [B, action_dim] f32."""
    B, sdim = state.shape
    F = w_stack.shape[-1]

    # Pick a batch tile: large tiles for big batches, minimal sublane-aligned
    # tile for tiny batches (keeps grid=1 and avoids wasted padding work).
    if B >= block_b:
        tb = block_b
    else:
        tb = max(8, ((B + 7) // 8) * 8)
    Bp = pl.cdiv(B, tb) * tb

    # Pad batch to a tile multiple and features to the lane-dense width.
    x = jnp.pad(state, ((0, Bp - B), (0, F - sdim)))

    out = pl.pallas_call(
        _actor_kernel,
        out_shape=jax.ShapeDtypeStruct((Bp, F), jnp.float32),
        grid=(Bp // tb,),
        in_specs=[
            # Batch stream: one tile per grid step (double-buffered by Pallas).
            pl.BlockSpec((tb, F), lambda i: (i, 0)),
            # Weights / biases: constant index_map -> DMA'd once, stay resident.
            pl.BlockSpec(w_stack.shape, lambda i: (0, 0, 0)),
            pl.BlockSpec(b_stack.shape, lambda i: (0, 0)),
        ],
        out_specs=pl.BlockSpec((tb, F), lambda i: (i, 0)),
        compiler_params=pltpu.CompilerParams(
            dimension_semantics=("parallel",)),
    )(x, w_stack, b_stack)

    return out[:B, :action_dim]


def init_actor_params(key, state_dim, action_dim, hidden_dim):
    """Deterministic init mimicking PyTorch nn.Linear default
    (uniform +-1/sqrt(fan_in)).  Weights stored pre-transposed as (in, out),
    biases as (out,)."""
    dims = [(state_dim, hidden_dim),
            (hidden_dim, hidden_dim),
            (hidden_dim, hidden_dim),
            (hidden_dim, action_dim)]
    names = ["i", "1", "2", "f"]
    params = {}
    for (fan_in, fan_out), n in zip(dims, names):
        key, kw, kb = jax.random.split(key, 3)
        bound = 1.0 / jnp.sqrt(jnp.float32(fan_in))
        params[f"w{n}"] = jax.random.uniform(
            kw, (fan_in, fan_out), jnp.float32, -bound, bound)
        params[f"b{n}"] = jax.random.uniform(
            kb, (fan_out,), jnp.float32, -bound, bound)
    return params


def pack_actor_params(params, f=_LANES):
    """Zero-pad every layer to (f, f) / (f,) and stack: W (4,f,f), b (4,f)."""
    def pad_w(w):
        return jnp.pad(w, ((0, f - w.shape[0]), (0, f - w.shape[1])))

    def pad_b(b):
        return jnp.pad(b, (0, f - b.shape[0]))

    w_stack = jnp.stack([pad_w(params["wi"]), pad_w(params["w1"]),
                         pad_w(params["w2"]), pad_w(params["wf"])])
    b_stack = jnp.stack([pad_b(params["bi"]), pad_b(params["b1"]),
                         pad_b(params["b2"]), pad_b(params["bf"])])
    return w_stack, b_stack


def actor_forward_ref(state, params):
    """Pure-JAX reference (unpadded) for correctness checking."""
    h = jnp.maximum(state @ params["wi"] + params["bi"], 0.0)
    h = jnp.maximum(h @ params["w1"] + params["b1"], 0.0)
    h = jnp.maximum(h @ params["w2"] + params["b2"], 0.0)
    h = jnp.maximum(h @ params["wf"] + params["bf"], 0.0)
    return h


if __name__ == "__main__":
    # King-moves windy gridworld: 2-D state (row, col), 8 actions.
    batch, state_dim, action_dim, hidden_dim = 2, 2, 8, 32

    key = jax.random.PRNGKey(0)
    key, k_state = jax.random.split(key)
    state = jax.random.normal(k_state, (batch, state_dim), jnp.float32)
    params = init_actor_params(key, state_dim, action_dim, hidden_dim)
    w_stack, b_stack = pack_actor_params(params)

    # Tiny-batch path (grid = 1).
    out = actor_forward(state, w_stack, b_stack, action_dim=action_dim)
    out = jax.block_until_ready(out)
    ref = actor_forward_ref(state, params)
    assert out.shape == (batch, action_dim)
    assert jnp.allclose(out, ref, atol=1e-5, rtol=1e-5)

    # Batched path (exercises the multi-step batch grid + resident weights).
    big_batch = 64
    key, k_big = jax.random.split(key)
    state_big = jax.random.normal(k_big, (big_batch, state_dim), jnp.float32)
    out_big = actor_forward(state_big, w_stack, b_stack,
                            action_dim=action_dim, block_b=16)
    out_big = jax.block_until_ready(out_big)
    ref_big = actor_forward_ref(state_big, params)
    assert out_big.shape == (big_batch, action_dim)
    assert jnp.allclose(out_big, ref_big, atol=1e-5, rtol=1e-5)

    print("KERNEL_OK")
</pallas_src>

<mosaic_0001>
module attributes {stable_mosaic.version = 11 : i64} {
  func.func @_actor_kernel(%arg0: i32, %arg1: memref<8x128xf32, #tpu.memory_space<vmem>>, %arg2: memref<4x128x128xf32, #tpu.memory_space<vmem>>, %arg3: memref<4x128xf32, #tpu.memory_space<vmem>>, %arg4: memref<8x128xf32, #tpu.memory_space<vmem>>) attributes {dimension_semantics = [#tpu.dimension_semantics<parallel>], iteration_bounds = array<i64: 1>, scalar_prefetch = 0 : i64, scratch_operands = 0 : i64, tpu.core_type = #tpu.core_type<tc>, window_params = [{transform_indices = @transform_0, window_bounds = array<i64: 8, 128>}, {pipeline_mode = #tpu.pipeline_mode<synchronous>, transform_indices = @transform_1, window_bounds = array<i64: 4, 128, 128>}, {pipeline_mode = #tpu.pipeline_mode<synchronous>, transform_indices = @transform_2, window_bounds = array<i64: 4, 128>}, {transform_indices = @transform_3, window_bounds = array<i64: 8, 128>}]} {
    %c0 = arith.constant 0 : index
    %c0_0 = arith.constant 0 : index
    %0 = vector.load %arg1[%c0, %c0_0] : memref<8x128xf32, #tpu.memory_space<vmem>>, vector<8x128xf32>
    %c0_1 = arith.constant 0 : index
    %c0_2 = arith.constant 0 : index
    %c0_3 = arith.constant 0 : index
    %1 = vector.load %arg2[%c0_1, %c0_2, %c0_3] : memref<4x128x128xf32, #tpu.memory_space<vmem>>, vector<1x128x128xf32>
    %2 = vector.shape_cast %1 : vector<1x128x128xf32> to vector<128x128xf32>
    %cst = arith.constant dense<0.000000e+00> : vector<8x128xf32>
    %3 = tpu.matmul %0, %2, %cst {dimension_numbers = #tpu.dot_dimension_numbers<[1], [0], [0], [1], [0, 0, 1, 1], [], []>} : vector<8x128xf32>, vector<128x128xf32>, vector<8x128xf32> -> vector<8x128xf32>
    %c0_4 = arith.constant 0 : index
    %c0_5 = arith.constant 0 : index
    %4 = vector.load %arg3[%c0_4, %c0_5] : memref<4x128xf32, #tpu.memory_space<vmem>>, vector<1x128xf32>
    %5 = vector.broadcast %4 : vector<1x128xf32> to vector<8x128xf32>
    %6 = arith.addf %3, %5 : vector<8x128xf32>
    %cst_6 = arith.constant 0.000000e+00 : f32
    %7 = vector.broadcast %cst_6 : f32 to vector<8x128xf32>
    %8 = arith.maximumf %6, %7 : vector<8x128xf32>
    %c1 = arith.constant 1 : index
    %c0_7 = arith.constant 0 : index
    %c0_8 = arith.constant 0 : index
    %9 = vector.load %arg2[%c1, %c0_7, %c0_8] : memref<4x128x128xf32, #tpu.memory_space<vmem>>, vector<1x128x128xf32>
    %10 = vector.shape_cast %9 : vector<1x128x128xf32> to vector<128x128xf32>
    %cst_9 = arith.constant dense<0.000000e+00> : vector<8x128xf32>
    %11 = tpu.matmul %8, %10, %cst_9 {dimension_numbers = #tpu.dot_dimension_numbers<[1], [0], [0], [1], [0, 0, 1, 1], [], []>} : vector<8x128xf32>, vector<128x128xf32>, vector<8x128xf32> -> vector<8x128xf32>
    %c1_10 = arith.constant 1 : index
    %c0_11 = arith.constant 0 : index
    %12 = vector.load %arg3[%c1_10, %c0_11] : memref<4x128xf32, #tpu.memory_space<vmem>>, vector<1x128xf32>
    %13 = vector.broadcast %12 : vector<1x128xf32> to vector<8x128xf32>
    %14 = arith.addf %11, %13 : vector<8x128xf32>
    %cst_12 = arith.constant 0.000000e+00 : f32
    %15 = vector.broadcast %cst_12 : f32 to vector<8x128xf32>
    %16 = arith.maximumf %14, %15 : vector<8x128xf32>
    %c2 = arith.constant 2 : index
    %c0_13 = arith.constant 0 : index
    %c0_14 = arith.constant 0 : index
    %17 = vector.load %arg2[%c2, %c0_13, %c0_14] : memref<4x128x128xf32, #tpu.memory_space<vmem>>, vector<1x128x128xf32>
    %18 = vector.shape_cast %17 : vector<1x128x128xf32> to vector<128x128xf32>
    %cst_15 = arith.constant dense<0.000000e+00> : vector<8x128xf32>
    %19 = tpu.matmul %16, %18, %cst_15 {dimension_numbers = #tpu.dot_dimension_numbers<[1], [0], [0], [1], [0, 0, 1, 1], [], []>} : vector<8x128xf32>, vector<128x128xf32>, vector<8x128xf32> -> vector<8x128xf32>
    %c2_16 = arith.constant 2 : index
    %c0_17 = arith.constant 0 : index
    %20 = vector.load %arg3[%c2_16, %c0_17] : memref<4x128xf32, #tpu.memory_space<vmem>>, vector<1x128xf32>
    %21 = vector.broadcast %20 : vector<1x128xf32> to vector<8x128xf32>
    %22 = arith.addf %19, %21 : vector<8x128xf32>
    %cst_18 = arith.constant 0.000000e+00 : f32
    %23 = vector.broadcast %cst_18 : f32 to vector<8x128xf32>
    %24 = arith.maximumf %22, %23 : vector<8x128xf32>
    %c3 = arith.constant 3 : index
    %c0_19 = arith.constant 0 : index
    %c0_20 = arith.constant 0 : index
    %25 = vector.load %arg2[%c3, %c0_19, %c0_20] : memref<4x128x128xf32, #tpu.memory_space<vmem>>, vector<1x128x128xf32>
    %26 = vector.shape_cast %25 : vector<1x128x128xf32> to vector<128x128xf32>
    %cst_21 = arith.constant dense<0.000000e+00> : vector<8x128xf32>
    %27 = tpu.matmul %24, %26, %cst_21 {dimension_numbers = #tpu.dot_dimension_numbers<[1], [0], [0], [1], [0, 0, 1, 1], [], []>} : vector<8x128xf32>, vector<128x128xf32>, vector<8x128xf32> -> vector<8x128xf32>
    %c3_22 = arith.constant 3 : index
    %c0_23 = arith.constant 0 : index
    %28 = vector.load %arg3[%c3_22, %c0_23] : memref<4x128xf32, #tpu.memory_space<vmem>>, vector<1x128xf32>
    %29 = vector.broadcast %28 : vector<1x128xf32> to vector<8x128xf32>
    %30 = arith.addf %27, %29 : vector<8x128xf32>
    %cst_24 = arith.constant 0.000000e+00 : f32
    %31 = vector.broadcast %cst_24 : f32 to vector<8x128xf32>
    %32 = arith.maximumf %30, %31 : vector<8x128xf32>
    %c0_25 = arith.constant 0 : index
    %c0_26 = arith.constant 0 : index
    %33 = vector.load %arg4[%c0_25, %c0_26] : memref<8x128xf32, #tpu.memory_space<vmem>>, vector<8x128xf32>
    tpu.vector_store %arg4[%c0_25, %c0_26], %32 {strides = array<i32>} : memref<8x128xf32, #tpu.memory_space<vmem>>, vector<8x128xf32>,
    return
  }
  func.func @transform_0(%arg0: i32) -> (i32, i32) {
    %c0_i32 = arith.constant 0 : i32
    %c0_i32_0 = arith.constant 0 : i32
    return %arg0, %c0_i32 : i32, i32
  }
  func.func @transform_1(%arg0: i32) -> (i32, i32, i32) {
    %c0_i32 = arith.constant 0 : i32
    %c0_i32_0 = arith.constant 0 : i32
    %c0_i32_1 = arith.constant 0 : i32
    %c0_i32_2 = arith.constant 0 : i32
    return %c0_i32, %c0_i32_0, %c0_i32_1 : i32, i32, i32
  }
  func.func @transform_2(%arg0: i32) -> (i32, i32) {
    %c0_i32 = arith.constant 0 : i32
    %c0_i32_0 = arith.constant 0 : i32
    %c0_i32_1 = arith.constant 0 : i32
    return %c0_i32, %c0_i32_0 : i32, i32
  }
  func.func @transform_3(%arg0: i32) -> (i32, i32) {
    %c0_i32 = arith.constant 0 : i32
    %c0_i32_0 = arith.constant 0 : i32
    return %arg0, %c0_i32 : i32, i32
  }
}

</mosaic_0001>

<llo_original>
// kernel: actor_forward.1
$region0: #{actor_forward.1}
  #allocation0 [shape = 'u32[]', space=smem, size = 0x4, offset = 0x4, fixed_abs, tag = 'smem constant byte address 0x4 - core index']
  #allocation1 [shape = 'u32[72,128]{1,0:T(1,128)}', space=vmem, size = 0x9000, scoped, tag = 'internal scratch']
  %s0 = inlined_call_operand.vmem [shape: f32[8,128], index: 0, kind: input, shape index: {}]
  %s1 = inlined_call_operand.hbm [shape: f32[4,128,128], index: 1, kind: input, shape index: {}]
  %s2 = inlined_call_operand.vmem [shape: f32[4,128], index: 2, kind: input, shape index: {}]
  %s3 = inlined_call_operand.vmem [shape: f32[8,128], index: 3, kind: output, shape index: {}]
  %s4 = sld [smem:[#allocation0]]
  $region26: #{actor_forward.1} parent=0
    _
  %s6 = ssub.s32 1, %s4
  %s7 = scalar_select 0, %s6, %s4
  $region1: #{actor_forward.1} parent=0
    #allocation2 [shape = 'u8[262144]{0}', space=vmem, size = 0x40000, scoped, tag = 'input window, operand 1, single buffered']
    #allocation3 [shape = 's32[1]{0}', space=sflag, size = 0x4, scoped, tag = 'scoped memory for actor_forward.1']
    %8 = vsyncpa [#allocation3], 0
    // Predicated region
    $region2: #{actor_forward.1} parent=1 // pred_check
      _
    $region3: #{actor_forward.1} parent=1 // pred_check_branch
      %10 = sbr.rel (0) target = $region5
    $region4: #{actor_forward.1} parent=1 // pred_region
      _
    $region5: #{actor_forward.1} parent=1 // pred_fallthru
      _
    // Predicated region
    $region6: #{actor_forward.1} parent=1 // pred_check
      _
    $region7: #{actor_forward.1} parent=1 // pred_check_branch
      %12 = sbr.rel (0) target = $region9
    $region8: #{actor_forward.1} parent=1 // pred_region
      %14 = vsyncadd [#allocation3], 0
      %s15 = sshll.u32 %s1, 4
      %s16 = int_to_ptr.hbm [resolvable:$true] %s15
      %s17 = sshll.u32 [#allocation2], 4
      %s18 = int_to_ptr.vmem [resolvable:$true] %s17
      %23 = dma.hbm_to_vmem [thread:$0]  %s16, 8192, %s18, [#allocation3], 128, 128, 8
    $region9: #{actor_forward.1} parent=1 // pred_fallthru
      _
    // Predicated region
    $region10: #{actor_forward.1} parent=1 // pred_check
      _
    $region11: #{actor_forward.1} parent=1 // pred_check_branch
      %25 = sbr.rel (0) target = $region13
    $region12: #{actor_forward.1} parent=1 // pred_region
      _
    $region13: #{actor_forward.1} parent=1 // pred_fallthru
      _
    // Predicated region
    $region14: #{actor_forward.1} parent=1 // pred_check
      _
    $region15: #{actor_forward.1} parent=1 // pred_check_branch
      %27 = sbr.rel (0) target = $region17
    $region16: #{actor_forward.1} parent=1 // pred_region
      %29 = dma.done [#allocation3], 8192
    $region17: #{actor_forward.1} parent=1 // pred_fallthru
      _
    %v30 = vld [vmem:[%s0] sm:$0xff]
    %v31 = vld [vmem:[#allocation2] sm:$0xff]
    %v32 = vld [vmem:[#allocation2 + $0x8] sm:$0xff]
    %v33 = vld [vmem:[#allocation2 + $0x10] sm:$0xff]
    %v34 = vld [vmem:[#allocation2 + $0x18] sm:$0xff]
    %v35 = vld [vmem:[#allocation2 + $0x20] sm:$0xff]
    %v36 = vld [vmem:[#allocation2 + $0x28] sm:$0xff]
    %v37 = vld [vmem:[#allocation2 + $0x30] sm:$0xff]
    %v38 = vld [vmem:[#allocation2 + $0x38] sm:$0xff]
    %v39 = vld [vmem:[#allocation2 + $0x40] sm:$0xff]
    %v40 = vld [vmem:[#allocation2 + $0x48] sm:$0xff]
    %v41 = vld [vmem:[#allocation2 + $0x50] sm:$0xff]
    %v42 = vld [vmem:[#allocation2 + $0x58] sm:$0xff]
    %v43 = vld [vmem:[#allocation2 + $0x60] sm:$0xff]
    %v44 = vld [vmem:[#allocation2 + $0x68] sm:$0xff]
    %v45 = vld [vmem:[#allocation2 + $0x70] sm:$0xff]
    %v46 = vld [vmem:[#allocation2 + $0x78] sm:$0xff]
    %v47 = vld [vmem:[%s2] sm:$0x1]
    %v48 = vperm.slane %v47, 0
    %49 = vmatpush.msra.mxu0 %v46
    %50 = vmatpush.msra.mxu0 %v45
    %51 = vmatpush.msra.mxu0 %v44
    %52 = vmatpush.msra.mxu0 %v43
    %53 = vmatpush.msra.mxu0 %v42
    %54 = vmatpush.msra.mxu0 %v41
    %55 = vmatpush.msra.mxu0 %v40
    %56 = vmatpush.msra.mxu0 %v39
    %57 = vmatpush.msra.mxu0 %v38
    %58 = vmatpush.msra.mxu0 %v37
    %59 = vmatpush.msra.mxu0 %v36
    %60 = vmatpush.msra.mxu0 %v35
    %61 = vmatpush.msra.mxu0 %v34
    %62 = vmatpush.msra.mxu0 %v33
    %63 = vmatpush.msra.mxu0 %v32
    %64 = vmatpush.msra.mxu0 %v31
    %65 = vmatmul.f32.gmra.mxu0 %v30
    %v66 = vpop.f32.mrf.mxu0
    %v67 = vadd.f32 %v48, %v66
    %68 = vdwg.mxu0
    %v69 = vmax.f32 %v67, 0.0
    %s70 = scalar_lea.vmem [#allocation2], 128
    %v71 = vld [vmem:[%s70] sm:$0xff]
    %v72 = vld [vmem:[%s70 + $0x8] sm:$0xff]
    %v73 = vld [vmem:[%s70 + $0x10] sm:$0xff]
    %v74 = vld [vmem:[%s70 + $0x18] sm:$0xff]
    %v75 = vld [vmem:[%s70 + $0x20] sm:$0xff]
    %v76 = vld [vmem:[%s70 + $0x28] sm:$0xff]
    %v77 = vld [vmem:[%s70 + $0x30] sm:$0xff]
    %v78 = vld [vmem:[%s70 + $0x38] sm:$0xff]
    %v79 = vld [vmem:[%s70 + $0x40] sm:$0xff]
    %v80 = vld [vmem:[%s70 + $0x48] sm:$0xff]
    %v81 = vld [vmem:[%s70 + $0x50] sm:$0xff]
    %v82 = vld [vmem:[%s70 + $0x58] sm:$0xff]
    %v83 = vld [vmem:[%s70 + $0x60] sm:$0xff]
    %v84 = vld [vmem:[%s70 + $0x68] sm:$0xff]
    %v85 = vld [vmem:[%s70 + $0x70] sm:$0xff]
    %v86 = vld [vmem:[%s70 + $0x78] sm:$0xff]
    %v87 = vld [vmem:[%s2 + $0x1] sm:$0x1]
    %v88 = vperm.slane %v87, 0
    %89 = vmatpush.msra.mxu0 %v86
    %90 = vmatpush.msra.mxu0 %v85
    %91 = vmatpush.msra.mxu0 %v84
    %92 = vmatpush.msra.mxu0 %v83
    %93 = vmatpush.msra.mxu0 %v82
    %94 = vmatpush.msra.mxu0 %v81
    %95 = vmatpush.msra.mxu0 %v80
    %96 = vmatpush.msra.mxu0 %v79
    %97 = vmatpush.msra.mxu0 %v78
    %98 = vmatpush.msra.mxu0 %v77
    %99 = vmatpush.msra.mxu0 %v76
    %100 = vmatpush.msra.mxu0 %v75
    %101 = vmatpush.msra.mxu0 %v74
    %102 = vmatpush.msra.mxu0 %v73
    %103 = vmatpush.msra.mxu0 %v72
    %104 = vmatpush.msra.mxu0 %v71
    %105 = vmatmul.f32.gmra.mxu0 %v69
    %v106 = vpop.f32.mrf.mxu0
    %v107 = vadd.f32 %v88, %v106
    %108 = vdwg.mxu0
    %v109 = vmax.f32 %v107, 0.0
    %s110 = scalar_lea.vmem [#allocation2], 256
    %v111 = vld [vmem:[%s110] sm:$0xff]
    %v112 = vld [vmem:[%s110 + $0x8] sm:$0xff]
    %v113 = vld [vmem:[%s110 + $0x10] sm:$0xff]
    %v114 = vld [vmem:[%s110 + $0x18] sm:$0xff]
    %v115 = vld [vmem:[%s110 + $0x20] sm:$0xff]
    %v116 = vld [vmem:[%s110 + $0x28] sm:$0xff]
    %v117 = vld [vmem:[%s110 + $0x30] sm:$0xff]
    %v118 = vld [vmem:[%s110 + $0x38] sm:$0xff]
    %v119 = vld [vmem:[%s110 + $0x40] sm:$0xff]
    %v120 = vld [vmem:[%s110 + $0x48] sm:$0xff]
    %v121 = vld [vmem:[%s110 + $0x50] sm:$0xff]
    %v122 = vld [vmem:[%s110 + $0x58] sm:$0xff]
    %v123 = vld [vmem:[%s110 + $0x60] sm:$0xff]
    %v124 = vld [vmem:[%s110 + $0x68] sm:$0xff]
    %v125 = vld [vmem:[%s110 + $0x70] sm:$0xff]
    %v126 = vld [vmem:[%s110 + $0x78] sm:$0xff]
    %v127 = vld [vmem:[%s2 + $0x2] sm:$0x1]
    %v128 = vperm.slane %v127, 0
    %129 = vmatpush.msra.mxu0 %v126
    %130 = vmatpush.msra.mxu0 %v125
    %131 = vmatpush.msra.mxu0 %v124
    %132 = vmatpush.msra.mxu0 %v123
    %133 = vmatpush.msra.mxu0 %v122
    %134 = vmatpush.msra.mxu0 %v121
    %135 = vmatpush.msra.mxu0 %v120
    %136 = vmatpush.msra.mxu0 %v119
    %137 = vmatpush.msra.mxu0 %v118
    %138 = vmatpush.msra.mxu0 %v117
    %139 = vmatpush.msra.mxu0 %v116
    %140 = vmatpush.msra.mxu0 %v115
    %141 = vmatpush.msra.mxu0 %v114
    %142 = vmatpush.msra.mxu0 %v113
    %143 = vmatpush.msra.mxu0 %v112
    %144 = vmatpush.msra.mxu0 %v111
    %145 = vmatmul.f32.gmra.mxu0 %v109
    %v146 = vpop.f32.mrf.mxu0
    %v147 = vadd.f32 %v128, %v146
    %148 = vdwg.mxu0
    %v149 = vmax.f32 %v147, 0.0
    %s150 = scalar_lea.vmem [#allocation2], 384
    %v151 = vld [vmem:[%s150] sm:$0xff]
    %v152 = vld [vmem:[%s150 + $0x8] sm:$0xff]
    %v153 = vld [vmem:[%s150 + $0x10] sm:$0xff]
    %v154 = vld [vmem:[%s150 + $0x18] sm:$0xff]
    %v155 = vld [vmem:[%s150 + $0x20] sm:$0xff]
    %v156 = vld [vmem:[%s150 + $0x28] sm:$0xff]
    %v157 = vld [vmem:[%s150 + $0x30] sm:$0xff]
    %v158 = vld [vmem:[%s150 + $0x38] sm:$0xff]
    %v159 = vld [vmem:[%s150 + $0x40] sm:$0xff]
    %v160 = vld [vmem:[%s150 + $0x48] sm:$0xff]
    %v161 = vld [vmem:[%s150 + $0x50] sm:$0xff]
    %v162 = vld [vmem:[%s150 + $0x58] sm:$0xff]
    %v163 = vld [vmem:[%s150 + $0x60] sm:$0xff]
    %v164 = vld [vmem:[%s150 + $0x68] sm:$0xff]
    %v165 = vld [vmem:[%s150 + $0x70] sm:$0xff]
    %v166 = vld [vmem:[%s150 + $0x78] sm:$0xff]
    %v167 = vld [vmem:[%s2 + $0x3] sm:$0x1]
    %v168 = vperm.slane %v167, 0
    %169 = vmatpush.msra.mxu0 %v166
    %170 = vmatpush.msra.mxu0 %v165
    %171 = vmatpush.msra.mxu0 %v164
    %172 = vmatpush.msra.mxu0 %v163
    %173 = vmatpush.msra.mxu0 %v162
    %174 = vmatpush.msra.mxu0 %v161
    %175 = vmatpush.msra.mxu0 %v160
    %176 = vmatpush.msra.mxu0 %v159
    %177 = vmatpush.msra.mxu0 %v158
    %178 = vmatpush.msra.mxu0 %v157
    %179 = vmatpush.msra.mxu0 %v156
    %180 = vmatpush.msra.mxu0 %v155
    %181 = vmatpush.msra.mxu0 %v154
    %182 = vmatpush.msra.mxu0 %v153
    %183 = vmatpush.msra.mxu0 %v152
    %184 = vmatpush.msra.mxu0 %v151
    %185 = vmatmul.f32.gmra.mxu0 %v149
    %v186 = vpop.f32.mrf.mxu0
    %v187 = vadd.f32 %v168, %v186
    %188 = vdwg.mxu0
    %v189 = vmax.f32 %v187, 0.0
    %190 = vst [vmem:[%s3] sm:$0xff] %v189
    // Predicated region
    $region18: #{actor_forward.1} parent=1 // pred_check
      _
    $region19: #{actor_forward.1} parent=1 // pred_check_branch
      %192 = sbr.rel (0) target = $region21
    $region20: #{actor_forward.1} parent=1 // pred_region
      _
    $region21: #{actor_forward.1} parent=1 // pred_fallthru
      _
    // Predicated region
    $region22: #{actor_forward.1} parent=1 // pred_check
      _
    $region23: #{actor_forward.1} parent=1 // pred_check_branch
      %194 = sbr.rel (0) target = $region25
    $region24: #{actor_forward.1} parent=1 // pred_region
      _
    $region25: #{actor_forward.1} parent=1 // pred_fallthru
      _
    %195 = vsyncpa [#allocation3], 1

</llo_original>
